<compile_context>
chip_gen: v7x
topology: tpu7x:2x2x1
jax: 0.10.0
libtpu: 0.0.40
codegen_flags: <defaults>
</compile_context>

<pallas_src>
import math
from functools import partial

import jax
import jax.numpy as jnp
from jax.experimental import pallas as pl
from jax.experimental.pallas import tpu as pltpu


def _round_up(x, m):
    return ((x + m - 1) // m) * m


# ----------------------------------------------------------------------------
# Fused LayerNorm(K) + Linear(K -> N, no bias) Pallas kernel
#   kernel computes:  ((x - mean) * rsqrt(var + eps)) @ W' + bias
#   where W' = gamma[:, None] * W  and  bias = beta @ W  (affine pre-folded).
# ----------------------------------------------------------------------------
def _ln_matmul_kernel(eps, x_ref, w_ref, b_ref, o_ref):
    """x:(tm,K) bf16, w:(K,Np) bf16, bias:(1,Np) f32 -> o:(tm,Np) f32."""
    x = x_ref[...].astype(jnp.float32)                      # upcast only for LN stats
    mean = jnp.mean(x, axis=-1, keepdims=True)
    xc = x - mean
    var = jnp.mean(xc * xc, axis=-1, keepdims=True)         # biased, like nn.LayerNorm
    inv = jax.lax.rsqrt(var + eps)                          # EUP
    y = (xc * inv).astype(w_ref.dtype)                      # bf16 MXU input
    o_ref[...] = (jnp.dot(y, w_ref[...], preferred_element_type=jnp.float32)
                  + b_ref[...]).astype(o_ref.dtype)


def _choose_tiling(M, K, Np, x_bytes, budget=24 << 20):
    """Pick the M-tile and a footprint-derived VMEM limit (v7x-safe)."""
    # Resident weight (bf16) + bias (f32); assume default double-buffering.
    fixed = 2 * (K * Np * 2 + Np * 4)
    # Per activation row: x tile + f32 out tile, each double-buffered.
    per_row = 2 * (K * x_bytes + Np * 4)
    tm_fit = max(8, (budget - fixed) // per_row)
    # Keep >= 4 grid steps when M allows so each v7x TensorCore gets a
    # pipelined (>= 2-step) share of the "parallel" axis.
    tm_pipe = max(8, -(-M // 4))
    tm = min(1024, tm_fit, tm_pipe, M)
    tm = max(8, _round_up(tm, 8))
    tm = min(tm, _round_up(M, 8))

    vmem_needed = fixed + per_row * tm
    vmem_limit = int(min(48 << 20, max(vmem_needed + (4 << 20), 8 << 20)))
    try:
        phys = pltpu.get_tpu_info().vmem_capacity_bytes
        vmem_limit = int(min(vmem_limit, phys * 3 // 4))
    except Exception:
        pass
    return tm, vmem_limit


def fused_layernorm_linear(x2d, gamma, beta, w_kn, eps=1e-5, out_dtype=jnp.float32):
    """x2d: [M, K] (bf16 ok); gamma/beta: [K]; w_kn: [K, N] -> [M, N] out_dtype."""
    M, K = x2d.shape
    N = w_kn.shape[1]
    # Lane-dense output stores for tiny dims (N < 128); no-op for Swin-sized dims.
    Np = _round_up(N, 128) if N < 128 else N

    # Fold the LN affine into the (static) weight; bias stays exact f32.
    g32 = gamma.astype(jnp.float32)
    b32 = beta.astype(jnp.float32)
    w32 = w_kn.astype(jnp.float32)
    w_eff = g32[:, None] * w32                              # (K, N)
    bias = b32 @ w32                                        # (N,)
    if Np != N:
        w_eff = jnp.pad(w_eff, ((0, 0), (0, Np - N)))
        bias = jnp.pad(bias, (0, Np - N))
    w_eff = w_eff.astype(jnp.bfloat16)
    bias = bias.reshape(1, Np)

    x_bytes = jnp.dtype(x2d.dtype).itemsize
    tm, vmem_limit = _choose_tiling(M, K, Np, x_bytes)

    out = pl.pallas_call(
        partial(_ln_matmul_kernel, eps),
        out_shape=jax.ShapeDtypeStruct((M, Np), out_dtype),
        grid=(pl.cdiv(M, tm),),
        in_specs=[
            pl.BlockSpec((tm, K), lambda i: (i, 0)),        # activations, tiled over M
            pl.BlockSpec((K, Np), lambda i: (0, 0)),        # folded weight (resident)
            pl.BlockSpec((1, Np), lambda i: (0, 0)),        # folded bias   (resident)
        ],
        out_specs=pl.BlockSpec((tm, Np), lambda i: (i, 0)),
        compiler_params=pltpu.CompilerParams(
            dimension_semantics=("parallel",),              # megacore over the M axis
            vmem_limit_bytes=vmem_limit),
    )(x2d, w_eff, bias)
    return out[:, :N] if Np != N else out


# ----------------------------------------------------------------------------
# PatchMerging forward (layout glue in plain JAX, heavy lifting in Pallas)
# ----------------------------------------------------------------------------
def _patch_merging_pad(x):
    """[..., H, W, D, C] -> [..., H/2, W/2, D/2, 8C]; transcribes the torch code."""
    H, W, D = x.shape[-4], x.shape[-3], x.shape[-2]
    pad = [(0, 0)] * (x.ndim - 4) + [(0, H % 2), (0, W % 2), (0, D % 2), (0, 0)]
    x = jnp.pad(x, pad)
    x0 = x[..., 0::2, 0::2, 0::2, :]
    x1 = x[..., 1::2, 0::2, 0::2, :]
    x2 = x[..., 0::2, 1::2, 0::2, :]
    x3 = x[..., 1::2, 1::2, 0::2, :]
    x4 = x[..., 0::2, 0::2, 1::2, :]
    x5 = x[..., 1::2, 0::2, 1::2, :]
    x6 = x[..., 0::2, 1::2, 1::2, :]
    x7 = x[..., 1::2, 1::2, 1::2, :]
    return jnp.concatenate([x0, x1, x2, x3, x4, x5, x6, x7], axis=-1)


def patch_merging_forward(params, x, eps=1e-5, compute_dtype=jnp.bfloat16):
    # Gather intermediate is produced in bf16 (half the HBM traffic); LN stats are f32
    # inside the kernel, MXU accumulates in f32.  ~1e-2 abs error vs the f32 reference.
    xm = _patch_merging_pad(x.astype(compute_dtype))        # [..., H/2, W/2, D/2, 8C]
    lead = xm.shape[:-1]
    K = xm.shape[-1]
    out2d = fused_layernorm_linear(
        xm.reshape(-1, K),
        params['norm_g'], params['norm_b'],
        params['reduction_w'].T,                            # torch (out, in) -> (K, N)
        eps=eps)
    return out2d.reshape(*lead, -1)


def patch_merging_ref(params, x, eps=1e-5):
    """Pure-JAX f32 reference (mirrors the torch module exactly)."""
    xm = _patch_merging_pad(x.astype(jnp.float32))
    mean = jnp.mean(xm, axis=-1, keepdims=True)
    var = jnp.mean(jnp.square(xm - mean), axis=-1, keepdims=True)
    y = (xm - mean) / jnp.sqrt(var + eps) * params['norm_g'] + params['norm_b']
    return y @ params['reduction_w'].T


# ----------------------------------------------------------------------------
# Deterministic parameter init mirroring the PyTorch module (expand_dim=True)
# ----------------------------------------------------------------------------
def init_params(key, dim, expand_dim=True):
    out_dim = 2 * dim if expand_dim else dim
    kw, kg, kb = jax.random.split(key, 3)
    bound = 1.0 / math.sqrt(8 * dim)                        # nn.Linear default range
    return {
        'norm_g': 1.0 + 0.1 * jax.random.normal(kg, (8 * dim,), jnp.float32),
        'norm_b': 0.1 * jax.random.normal(kb, (8 * dim,), jnp.float32),
        'reduction_w': jax.random.uniform(kw, (out_dim, 8 * dim),
                                          jnp.float32, -bound, bound),
    }


if __name__ == "__main__":
    key = jax.random.PRNGKey(0)
    pkey, xkey = jax.random.split(key)

    dim = 32
    params = init_params(pkey, dim, expand_dim=True)
    # [..., H, W, D, C]; odd D exercises the parity-pad path.
    x = jax.random.normal(xkey, (2, 16, 16, 15, dim), jnp.float32)

    fwd = jax.jit(patch_merging_forward)
    out = fwd(params, x)
    jax.block_until_ready(out)

    assert out.shape == (2, 8, 8, 8, 2 * dim), out.shape
    assert jnp.isfinite(out).all()

    ref = patch_merging_ref(params, x)
    max_err = float(jnp.max(jnp.abs(out - ref)))
    assert max_err < 5e-2, f"max abs err vs reference: {max_err}"
    print("KERNEL_OK")
</pallas_src>

<mosaic_0001>
module attributes {stable_mosaic.version = 11 : i64} {
  func.func @_ln_matmul_kernel(%arg0: i32, %arg1: memref<256x256xbf16, #tpu.memory_space<vmem>>, %arg2: memref<256x128xbf16, #tpu.memory_space<vmem>>, %arg3: memref<1x128xf32, #tpu.memory_space<vmem>>, %arg4: memref<256x128xf32, #tpu.memory_space<vmem>>) attributes {dimension_semantics = [#tpu.dimension_semantics<parallel>], iteration_bounds = array<i64: 4>, scalar_prefetch = 0 : i64, scratch_operands = 0 : i64, tpu.core_type = #tpu.core_type<tc>, window_params = [{transform_indices = @transform_0, window_bounds = array<i64: 256, 256>}, {pipeline_mode = #tpu.pipeline_mode<synchronous>, transform_indices = @transform_1, window_bounds = array<i64: 256, 128>}, {pipeline_mode = #tpu.pipeline_mode<synchronous>, transform_indices = @transform_2, window_bounds = array<i64: 1, 128>}, {transform_indices = @transform_3, window_bounds = array<i64: 256, 128>}]} {
    %c0 = arith.constant 0 : index
    %c0_0 = arith.constant 0 : index
    %0 = vector.load %arg1[%c0, %c0_0] : memref<256x256xbf16, #tpu.memory_space<vmem>>, vector<256x256xbf16>
    %1 = arith.extf %0 : vector<256x256xbf16> to vector<256x256xf32>
    %cst = arith.constant dense<0.000000e+00> : vector<256xf32>
    %2 = vector.multi_reduction <add>, %1, %cst [1] : vector<256x256xf32> to vector<256xf32>
    %3 = vector.shape_cast %2 : vector<256xf32> to vector<256x1xf32>
    %cst_1 = arith.constant 2.560000e+02 : f32
    %4 = vector.broadcast %cst_1 : f32 to vector<256x1xf32>
    %5 = arith.divf %3, %4 : vector<256x1xf32>
    %6 = vector.broadcast %5 : vector<256x1xf32> to vector<256x256xf32>
    %7 = arith.subf %1, %6 : vector<256x256xf32>
    %8 = arith.mulf %7, %7 : vector<256x256xf32>
    %cst_2 = arith.constant dense<0.000000e+00> : vector<256xf32>
    %9 = vector.multi_reduction <add>, %8, %cst_2 [1] : vector<256x256xf32> to vector<256xf32>
    %10 = vector.shape_cast %9 : vector<256xf32> to vector<256x1xf32>
    %cst_3 = arith.constant 2.560000e+02 : f32
    %11 = vector.broadcast %cst_3 : f32 to vector<256x1xf32>
    %12 = arith.divf %10, %11 : vector<256x1xf32>
    %cst_4 = arith.constant 9.99999974E-6 : f32
    %13 = vector.broadcast %cst_4 : f32 to vector<256x1xf32>
    %14 = arith.addf %12, %13 : vector<256x1xf32>
    %15 = math.rsqrt %14 : vector<256x1xf32>
    %16 = vector.broadcast %15 : vector<256x1xf32> to vector<256x256xf32>
    %17 = arith.mulf %7, %16 : vector<256x256xf32>
    %18 = arith.truncf %17 : vector<256x256xf32> to vector<256x256xbf16>
    %c0_5 = arith.constant 0 : index
    %c0_6 = arith.constant 0 : index
    %19 = vector.load %arg2[%c0_5, %c0_6] : memref<256x128xbf16, #tpu.memory_space<vmem>>, vector<256x128xbf16>
    %cst_7 = arith.constant dense<0.000000e+00> : vector<256x128xf32>
    %20 = tpu.matmul %18, %19, %cst_7 {dimension_numbers = #tpu.dot_dimension_numbers<[1], [0], [0], [1], [0, 0, 1, 1], [], []>} : vector<256x256xbf16>, vector<256x128xbf16>, vector<256x128xf32> -> vector<256x128xf32>
    %c0_8 = arith.constant 0 : index
    %c0_9 = arith.constant 0 : index
    %21 = vector.load %arg3[%c0_8, %c0_9] : memref<1x128xf32, #tpu.memory_space<vmem>>, vector<1x128xf32>
    %22 = vector.broadcast %21 : vector<1x128xf32> to vector<256x128xf32>
    %23 = arith.addf %20, %22 : vector<256x128xf32>
    %c0_10 = arith.constant 0 : index
    %c0_11 = arith.constant 0 : index
    %24 = vector.load %arg4[%c0_10, %c0_11] : memref<256x128xf32, #tpu.memory_space<vmem>>, vector<256x128xf32>
    tpu.vector_store %arg4[%c0_10, %c0_11], %23 {strides = array<i32>} : memref<256x128xf32, #tpu.memory_space<vmem>>, vector<256x128xf32>,
    return
  }
  func.func @transform_0(%arg0: i32) -> (i32, i32) {
    %c0_i32 = arith.constant 0 : i32
    %c0_i32_0 = arith.constant 0 : i32
    return %arg0, %c0_i32 : i32, i32
  }
  func.func @transform_1(%arg0: i32) -> (i32, i32) {
    %c0_i32 = arith.constant 0 : i32
    %c0_i32_0 = arith.constant 0 : i32
    %c0_i32_1 = arith.constant 0 : i32
    return %c0_i32, %c0_i32_0 : i32, i32
  }
  func.func @transform_2(%arg0: i32) -> (i32, i32) {
    %c0_i32 = arith.constant 0 : i32
    %c0_i32_0 = arith.constant 0 : i32
    %c0_i32_1 = arith.constant 0 : i32
    return %c0_i32, %c0_i32_0 : i32, i32
  }
  func.func @transform_3(%arg0: i32) -> (i32, i32) {
    %c0_i32 = arith.constant 0 : i32
    %c0_i32_0 = arith.constant 0 : i32
    return %arg0, %c0_i32 : i32, i32
  }
}

</mosaic_0001>

<llo_original>
// kernel: patch_merging_forward.1
$region0: #{patch_merging_forward.1}
  #allocation0 [shape = 'u32[]', space=smem, size = 0x4, offset = 0x4, fixed_abs, tag = 'smem constant byte address 0x4 - core index']
  #allocation1 [shape = 'u32[144,128]{1,0:T(1,128)}', space=vmem, size = 0x12000, scoped, tag = 'internal scratch']
  %s0 = inlined_call_operand.vmem [shape: bf16[1024,256], index: 0, kind: input, shape index: {}]
  %s1 = inlined_call_operand.vmem [shape: bf16[256,128], index: 1, kind: input, shape index: {}]
  %s2 = inlined_call_operand.vmem [shape: f32[1,128], index: 2, kind: input, shape index: {}]
  %s3 = inlined_call_operand.hbm [shape: f32[1024,128], index: 3, kind: output, shape index: {}]
  %s4 = sld [smem:[#allocation0]]
  $region45: #{patch_merging_forward.1} parent=0
    _
  %s6 = ssub.s32 1, %s4
  %s7 = scalar_select 0, %s6, %s4
  $region1: #{patch_merging_forward.1} parent=0
    #allocation2 [shape = 'u8[262144]{0}', space=vmem, size = 0x40000, scoped, tag = 'output window, operand 0']
    #allocation3 [shape = 's32[2]{0}', space=sflag, size = 0x8, scoped, tag = 'scoped memory for patch_merging_forward.1']
    %8 = vsyncpa [#allocation3], 0
    %s9 = scalar_lea.sflag [#allocation3], 1
    %10 = vsyncpa %s9, 0
    loop: start=0, step=1, limit=6
    $region2: #{patch_merging_forward.1} parent=1 // loop_pre_header
      _
    $region3: #{patch_merging_forward.1} parent=1 // loop_header
      %s12 = sphi 0, %s16
      %p13 = scmp.ge.s32.totalorder %s12, 6
      %s22 = sphi 0, %s24
      %s25 = sphi 0, %s22
      %s26 = sphi 0, %s25
      %s42 = sphi 0, %s26
      %s46 = sphi 0, %s46
      %s48 = sphi 0, %s46
      %s49 = sphi 0, %s48
      %s63 = sphi 0, %s49
      %s67 = sphi 0, %s67
      %s69 = sphi 0, %s67
      %s70 = sphi 0, %s69
      %s84 = sphi 0, %s70
      %s90 = sphi 0, %s92
      %s93 = sphi 0, %s90
      %s94 = sphi 0, %s93
      %s110 = sphi 0, %s94
    $region4: #{patch_merging_forward.1} parent=1 // loop_header_branch
      %15 = sbr.rel (%p13) target = $region8
    $region5: #{patch_merging_forward.1} parent=1 // loop_body
      %s17 = ssub.s32 %s12, 1
      %s18 = ssub.s32 %s12, 2
      %s19 = sadd.s32 %s12, 1
      %s20 = ssub.s32 %s12, %s19
      %p21 = scmp.eq.s32.totalorder %s20, 0
      %s23 = sadd.s32 %s22, 1
      %s24 = scalar_select %p21, %s22, %s23
      %p27 = pneg %p21
      %p28 = scmp.eq.s32.totalorder %s12, 3
      %p29 = por %p27, %p28
      %p30 = scmp.ne.s32.totalorder %s22, %s25
      %p31 = scmp.eq.s32.totalorder %s12, 0
      %p32 = por %p30, %p31
      %p33 = scmp.ne.s32.totalorder %s22, %s25
      %p34 = scmp.eq.s32.totalorder %s17, 3
      %p35 = por %p33, %p34
      %p36 = scmp.ne.s32.totalorder %s25, %s26
      %p37 = scmp.eq.s32.totalorder %s17, 0
      %p38 = por %p36, %p37
      %p39 = scmp.ne.s32.totalorder %s25, %s26
      %p40 = scmp.eq.s32.totalorder %s18, 3
      %p41 = por %p39, %p40
      %p43 = scmp.ne.s32.totalorder %s26, %s42
      %p44 = scmp.eq.s32.totalorder %s18, 0
      %p45 = por %p43, %p44
      %s47 = sadd.s32 %s46, 1
      %p50 = scmp.eq.s32.totalorder %s12, 3
      %p51 = scmp.ne.s32.totalorder %s46, %s48
      %p52 = scmp.eq.s32.totalorder %s12, 0
      %p53 = por %p51, %p52
      %p54 = scmp.ne.s32.totalorder %s46, %s48
      %p55 = scmp.eq.s32.totalorder %s17, 3
      %p56 = por %p54, %p55
      %p57 = scmp.ne.s32.totalorder %s48, %s49
      %p58 = scmp.eq.s32.totalorder %s17, 0
      %p59 = por %p57, %p58
      %p60 = scmp.ne.s32.totalorder %s48, %s49
      %p61 = scmp.eq.s32.totalorder %s18, 3
      %p62 = por %p60, %p61
      %p64 = scmp.ne.s32.totalorder %s49, %s63
      %p65 = scmp.eq.s32.totalorder %s18, 0
      %p66 = por %p64, %p65
      %s68 = sadd.s32 %s67, 1
      %p71 = scmp.eq.s32.totalorder %s12, 3
      %p72 = scmp.ne.s32.totalorder %s67, %s69
      %p73 = scmp.eq.s32.totalorder %s12, 0
      %p74 = por %p72, %p73
      %p75 = scmp.ne.s32.totalorder %s67, %s69
      %p76 = scmp.eq.s32.totalorder %s17, 3
      %p77 = por %p75, %p76
      %p78 = scmp.ne.s32.totalorder %s69, %s70
      %p79 = scmp.eq.s32.totalorder %s17, 0
      %p80 = por %p78, %p79
      %p81 = scmp.ne.s32.totalorder %s69, %s70
      %p82 = scmp.eq.s32.totalorder %s18, 3
      %p83 = por %p81, %p82
      %p85 = scmp.ne.s32.totalorder %s70, %s84
      %p86 = scmp.eq.s32.totalorder %s18, 0
      %p87 = por %p85, %p86
      %s88 = ssub.s32 %s12, %s19
      %p89 = scmp.eq.s32.totalorder %s88, 0
      %s91 = sadd.s32 %s90, 1
      %s92 = scalar_select %p89, %s90, %s91
      %p95 = pneg %p89
      %p96 = scmp.eq.s32.totalorder %s12, 3
      %p97 = por %p95, %p96
      %p98 = scmp.ne.s32.totalorder %s90, %s93
      %p99 = scmp.eq.s32.totalorder %s12, 0
      %p100 = por %p98, %p99
      %p101 = scmp.ne.s32.totalorder %s90, %s93
      %p102 = scmp.eq.s32.totalorder %s17, 3
      %p103 = por %p101, %p102
      %p104 = scmp.ne.s32.totalorder %s93, %s94
      %p105 = scmp.eq.s32.totalorder %s17, 0
      %p106 = por %p104, %p105
      %p107 = scmp.ne.s32.totalorder %s93, %s94
      %p108 = scmp.eq.s32.totalorder %s18, 3
      %p109 = por %p107, %p108
      %p111 = scmp.ne.s32.totalorder %s94, %s110
      %p112 = scmp.eq.s32.totalorder %s18, 0
      %p113 = por %p111, %p112
      %p114 = scmp.le.s32.totalorder 1, %s12
      %p115 = scmp.lt.s32.totalorder %s12, 5
      %p116 = pnand %p114, %p115
      %p117 = pneg %p116
      // Predicated region
      $region9: #{patch_merging_forward.1} parent=5 // pred_check
        _
      $region10: #{patch_merging_forward.1} parent=5 // pred_check_branch
        %119 = sbr.rel (%p116) target = $region12
      $region11: #{patch_merging_forward.1} parent=5 // pred_region
        %s120 = ssub.s32 %s12, 1
        // Predicated region
        $region13: #{patch_merging_forward.1} parent=11 // pred_check
          %p121 = pneg %p59
        $region14: #{patch_merging_forward.1} parent=11 // pred_check_branch
          %123 = sbr.rel (%p121) target = $region16
        $region15: #{patch_merging_forward.1} parent=11 // pred_region
          _
        $region16: #{patch_merging_forward.1} parent=11 // pred_fallthru
          _
        // Predicated region
        $region17: #{patch_merging_forward.1} parent=11 // pred_check
          %p124 = pneg %p80
        $region18: #{patch_merging_forward.1} parent=11 // pred_check_branch
          %126 = sbr.rel (%p124) target = $region20
        $region19: #{patch_merging_forward.1} parent=11 // pred_region
          _
        $region20: #{patch_merging_forward.1} parent=11 // pred_fallthru
          _
      $region12: #{patch_merging_forward.1} parent=5 // pred_fallthru
        _
      %p127 = scmp.lt.s32.totalorder %s12, 4
      // Predicated region
      $region21: #{patch_merging_forward.1} parent=5 // pred_check
        %p128 = pneg %p127
      $region22: #{patch_merging_forward.1} parent=5 // pred_check_branch
        %130 = sbr.rel (%p128) target = $region24
      $region23: #{patch_merging_forward.1} parent=5 // pred_region
        // Predicated region
        $region25: #{patch_merging_forward.1} parent=23 // pred_check
          %p131 = pneg %p32
        $region26: #{patch_merging_forward.1} parent=23 // pred_check_branch
          %133 = sbr.rel (%p131) target = $region28
        $region27: #{patch_merging_forward.1} parent=23 // pred_region
          %s134 = smul.u32 32, %s12
          %p135 = scmp.lt.s32.totalorder %s134, 127
          %s136 = scalar_select %p135, %s134, 127
          %s137 = smul.addr %s136, 2
          %s138 = smul.addr %s137, 4
          %s139 = scalar_lea.vmem %s0, %s138
          %s140 = smul.u32 32, %s12
        $region28: #{patch_merging_forward.1} parent=23 // pred_fallthru
          _
      $region24: #{patch_merging_forward.1} parent=5 // pred_fallthru
        _
      %p141 = scmp.le.s32.totalorder 1, %s12
      %p142 = scmp.lt.s32.totalorder %s12, 5
      %p143 = pnand %p141, %p142
      %p144 = pneg %p143
      // Predicated region
      $region29: #{patch_merging_forward.1} parent=5 // pred_check
        _
      $region30: #{patch_merging_forward.1} parent=5 // pred_check_branch
        %146 = sbr.rel (%p143) target = $region32
      $region31: #{patch_merging_forward.1} parent=5 // pred_region
        %s147 = ssub.s32 %s12, 1
        %s148 = smul.u32 32, %s17
        %p149 = scmp.lt.s32.totalorder %s148, 127
        %s150 = scalar_select %p149, %s148, 127
        %s151 = smul.addr %s150, 2
        %s152 = smul.addr %s151, 4
        %s153 = scalar_lea.vmem %s0, %s152
        %p154 = pneg %p38
        %p155 = pneg %p35
        %p156 = pneg %p59
        %p157 = pneg %p56
        %p158 = pneg %p80
        %p159 = pneg %p77
        %p160 = pneg %p106
        %p161 = pneg %p103
        %s162 = sand.u32 %s93, 1
        %s163 = scalar_lea.sflag [#allocation3], %s162
        %s164 = sand.u32 %s93, 1
        %s165 = smul.addr %s164, 256
        %s166 = scalar_lea.vmem [#allocation2], %s165
        %s167 = smul.u32 32, %s17
        %p168 = scmp.lt.s32.totalorder %s167, 127
        %s169 = scalar_select %p168, %s167, 127
        %s170 = smul.addr %s169, 2
        %s171 = smul.addr %s170, 4
        %s172 = scalar_lea.vmem %s0, %s171
        %s173 = smul.u32 32, %s17
        %s174 = smul.u32 32, %s17
        %v176 = vld [vmem:[%s172] sm:$0xff]
        %v177 = vld [vmem:[%s172 + $0x8] sm:$0xff]
        %v178 = vld [vmem:[%s172 + $0x10] sm:$0xff]
        %v179 = vld [vmem:[%s172 + $0x18] sm:$0xff]
        %v180 = vld [vmem:[%s172 + $0x20] sm:$0xff]
        %v181 = vld [vmem:[%s172 + $0x28] sm:$0xff]
        %v182 = vld [vmem:[%s172 + $0x30] sm:$0xff]
        %v183 = vld [vmem:[%s172 + $0x38] sm:$0xff]
        %v184 = vld [vmem:[%s172 + $0x40] sm:$0xff]
        %v185 = vld [vmem:[%s172 + $0x48] sm:$0xff]
        %v186 = vld [vmem:[%s172 + $0x50] sm:$0xff]
        %v187 = vld [vmem:[%s172 + $0x58] sm:$0xff]
        %v188 = vld [vmem:[%s172 + $0x60] sm:$0xff]
        %v189 = vld [vmem:[%s172 + $0x68] sm:$0xff]
        %v190 = vld [vmem:[%s172 + $0x70] sm:$0xff]
        %v191 = vld [vmem:[%s172 + $0x78] sm:$0xff]
        %v192 = vld [vmem:[%s172 + $0x80] sm:$0xff]
        %v193 = vld [vmem:[%s172 + $0x88] sm:$0xff]
        %v194 = vld [vmem:[%s172 + $0x90] sm:$0xff]
        %v195 = vld [vmem:[%s172 + $0x98] sm:$0xff]
        %v196 = vld [vmem:[%s172 + $0xa0] sm:$0xff]
        %v197 = vld [vmem:[%s172 + $0xa8] sm:$0xff]
        %v198 = vld [vmem:[%s172 + $0xb0] sm:$0xff]
        %v199 = vld [vmem:[%s172 + $0xb8] sm:$0xff]
        %v200 = vld [vmem:[%s172 + $0xc0] sm:$0xff]
        %v201 = vld [vmem:[%s172 + $0xc8] sm:$0xff]
        %v202 = vld [vmem:[%s172 + $0xd0] sm:$0xff]
        %v203 = vld [vmem:[%s172 + $0xd8] sm:$0xff]
        %v204 = vld [vmem:[%s172 + $0xe0] sm:$0xff]
        %v205 = vld [vmem:[%s172 + $0xe8] sm:$0xff]
        %v206 = vld [vmem:[%s172 + $0xf0] sm:$0xff]
        %v207 = vld [vmem:[%s172 + $0xf8] sm:$0xff]
        %v208 = vunpack.c.l.bf16 %v176
        %v209 = vunpack.c.h.bf16 %v176
        %v210 = vunpack.c.l.bf16 %v177
        %v211 = vunpack.c.h.bf16 %v177
        %v212 = vunpack.c.l.bf16 %v178
        %v213 = vunpack.c.h.bf16 %v178
        %v214 = vunpack.c.l.bf16 %v179
        %v215 = vunpack.c.h.bf16 %v179
        %v216 = vunpack.c.l.bf16 %v180
        %v217 = vunpack.c.h.bf16 %v180
        %v218 = vunpack.c.l.bf16 %v181
        %v219 = vunpack.c.h.bf16 %v181
        %v220 = vunpack.c.l.bf16 %v182
        %v221 = vunpack.c.h.bf16 %v182
        %v222 = vunpack.c.l.bf16 %v183
        %v223 = vunpack.c.h.bf16 %v183
        %v224 = vunpack.c.l.bf16 %v184
        %v225 = vunpack.c.h.bf16 %v184
        %v226 = vunpack.c.l.bf16 %v185
        %v227 = vunpack.c.h.bf16 %v185
        %v228 = vunpack.c.l.bf16 %v186
        %v229 = vunpack.c.h.bf16 %v186
        %v230 = vunpack.c.l.bf16 %v187
        %v231 = vunpack.c.h.bf16 %v187
        %v232 = vunpack.c.l.bf16 %v188
        %v233 = vunpack.c.h.bf16 %v188
        %v234 = vunpack.c.l.bf16 %v189
        %v235 = vunpack.c.h.bf16 %v189
        %v236 = vunpack.c.l.bf16 %v190
        %v237 = vunpack.c.h.bf16 %v190
        %v238 = vunpack.c.l.bf16 %v191
        %v239 = vunpack.c.h.bf16 %v191
        %v240 = vunpack.c.l.bf16 %v192
        %v241 = vunpack.c.h.bf16 %v192
        %v242 = vunpack.c.l.bf16 %v193
        %v243 = vunpack.c.h.bf16 %v193
        %v244 = vunpack.c.l.bf16 %v194
        %v245 = vunpack.c.h.bf16 %v194
        %v246 = vunpack.c.l.bf16 %v195
        %v247 = vunpack.c.h.bf16 %v195
        %v248 = vunpack.c.l.bf16 %v196
        %v249 = vunpack.c.h.bf16 %v196
        %v250 = vunpack.c.l.bf16 %v197
        %v251 = vunpack.c.h.bf16 %v197
        %v252 = vunpack.c.l.bf16 %v198
        %v253 = vunpack.c.h.bf16 %v198
        %v254 = vunpack.c.l.bf16 %v199
        %v255 = vunpack.c.h.bf16 %v199
        %v256 = vunpack.c.l.bf16 %v200
        %v257 = vunpack.c.h.bf16 %v200
        %v258 = vunpack.c.l.bf16 %v201
        %v259 = vunpack.c.h.bf16 %v201
        %v260 = vunpack.c.l.bf16 %v202
        %v261 = vunpack.c.h.bf16 %v202
        %v262 = vunpack.c.l.bf16 %v203
        %v263 = vunpack.c.h.bf16 %v203
        %v264 = vunpack.c.l.bf16 %v204
        %v265 = vunpack.c.h.bf16 %v204
        %v266 = vunpack.c.l.bf16 %v205
        %v267 = vunpack.c.h.bf16 %v205
        %v268 = vunpack.c.l.bf16 %v206
        %v269 = vunpack.c.h.bf16 %v206
        %v270 = vunpack.c.l.bf16 %v207
        %v271 = vunpack.c.h.bf16 %v207
        %v272 = vadd.f32 %v208, %v209
        %273 = vadd.xlane.f32.xlu0 %v272
        %v274 = vpop.xlane.xlu0 %273
        %v275 = vadd.f32 %v210, %v211
        %276 = vadd.xlane.f32.xlu0 %v275
        %v277 = vpop.xlane.xlu0 %276
        %v278 = vadd.f32 %v212, %v213
        %279 = vadd.xlane.f32.xlu0 %v278
        %v280 = vpop.xlane.xlu0 %279
        %v281 = vadd.f32 %v214, %v215
        %282 = vadd.xlane.f32.xlu0 %v281
        %v283 = vpop.xlane.xlu0 %282
        %v284 = vadd.f32 %v216, %v217
        %285 = vadd.xlane.f32.xlu0 %v284
        %v286 = vpop.xlane.xlu0 %285
        %v287 = vadd.f32 %v218, %v219
        %288 = vadd.xlane.f32.xlu0 %v287
        %v289 = vpop.xlane.xlu0 %288
        %v290 = vadd.f32 %v220, %v221
        %291 = vadd.xlane.f32.xlu0 %v290
        %v292 = vpop.xlane.xlu0 %291
        %v293 = vadd.f32 %v222, %v223
        %294 = vadd.xlane.f32.xlu0 %v293
        %v295 = vpop.xlane.xlu0 %294
        %v296 = vadd.f32 %v224, %v225
        %297 = vadd.xlane.f32.xlu0 %v296
        %v298 = vpop.xlane.xlu0 %297
        %v299 = vadd.f32 %v226, %v227
        %300 = vadd.xlane.f32.xlu0 %v299
        %v301 = vpop.xlane.xlu0 %300
        %v302 = vadd.f32 %v228, %v229
        %303 = vadd.xlane.f32.xlu0 %v302
        %v304 = vpop.xlane.xlu0 %303
        %v305 = vadd.f32 %v230, %v231
        %306 = vadd.xlane.f32.xlu0 %v305
        %v307 = vpop.xlane.xlu0 %306
        %v308 = vadd.f32 %v232, %v233
        %309 = vadd.xlane.f32.xlu0 %v308
        %v310 = vpop.xlane.xlu0 %309
        %v311 = vadd.f32 %v234, %v235
        %312 = vadd.xlane.f32.xlu0 %v311
        %v313 = vpop.xlane.xlu0 %312
        %v314 = vadd.f32 %v236, %v237
        %315 = vadd.xlane.f32.xlu0 %v314
        %v316 = vpop.xlane.xlu0 %315
        %v317 = vadd.f32 %v238, %v239
        %318 = vadd.xlane.f32.xlu0 %v317
        %v319 = vpop.xlane.xlu0 %318
        %v320 = vadd.f32 %v240, %v241
        %321 = vadd.xlane.f32.xlu0 %v320
        %v322 = vpop.xlane.xlu0 %321
        %v323 = vadd.f32 %v242, %v243
        %324 = vadd.xlane.f32.xlu0 %v323
        %v325 = vpop.xlane.xlu0 %324
        %v326 = vadd.f32 %v244, %v245
        %327 = vadd.xlane.f32.xlu0 %v326
        %v328 = vpop.xlane.xlu0 %327
        %v329 = vadd.f32 %v246, %v247
        %330 = vadd.xlane.f32.xlu0 %v329
        %v331 = vpop.xlane.xlu0 %330
        %v332 = vadd.f32 %v248, %v249
        %333 = vadd.xlane.f32.xlu0 %v332
        %v334 = vpop.xlane.xlu0 %333
        %v335 = vadd.f32 %v250, %v251
        %336 = vadd.xlane.f32.xlu0 %v335
        %v337 = vpop.xlane.xlu0 %336
        %v338 = vadd.f32 %v252, %v253
        %339 = vadd.xlane.f32.xlu0 %v338
        %v340 = vpop.xlane.xlu0 %339
        %v341 = vadd.f32 %v254, %v255
        %342 = vadd.xlane.f32.xlu0 %v341
        %v343 = vpop.xlane.xlu0 %342
        %v344 = vadd.f32 %v256, %v257
        %345 = vadd.xlane.f32.xlu0 %v344
        %v346 = vpop.xlane.xlu0 %345
        %v347 = vadd.f32 %v258, %v259
        %348 = vadd.xlane.f32.xlu0 %v347
        %v349 = vpop.xlane.xlu0 %348
        %v350 = vadd.f32 %v260, %v261
        %351 = vadd.xlane.f32.xlu0 %v350
        %v352 = vpop.xlane.xlu0 %351
        %v353 = vadd.f32 %v262, %v263
        %354 = vadd.xlane.f32.xlu0 %v353
        %v355 = vpop.xlane.xlu0 %354
        %v356 = vadd.f32 %v264, %v265
        %357 = vadd.xlane.f32.xlu0 %v356
        %v358 = vpop.xlane.xlu0 %357
        %v359 = vadd.f32 %v266, %v267
        %360 = vadd.xlane.f32.xlu0 %v359
        %v361 = vpop.xlane.xlu0 %360
        %v362 = vadd.f32 %v268, %v269
        %363 = vadd.xlane.f32.xlu0 %v362
        %v364 = vpop.xlane.xlu0 %363
        %v365 = vadd.f32 %v270, %v271
        %366 = vadd.xlane.f32.xlu0 %v365
        %v367 = vpop.xlane.xlu0 %366
        %v368 = vrcp.pop 256.0
        %v369 = vmul.f32 %v274, %v368
        %v370 = vmul.f32 %v277, %v368
        %v371 = vmul.f32 %v280, %v368
        %v372 = vmul.f32 %v283, %v368
        %v373 = vmul.f32 %v286, %v368
        %v374 = vmul.f32 %v289, %v368
        %v375 = vmul.f32 %v292, %v368
        %v376 = vmul.f32 %v295, %v368
        %v377 = vmul.f32 %v298, %v368
        %v378 = vmul.f32 %v301, %v368
        %v379 = vmul.f32 %v304, %v368
        %v380 = vmul.f32 %v307, %v368
        %v381 = vmul.f32 %v310, %v368
        %v382 = vmul.f32 %v313, %v368
        %v383 = vmul.f32 %v316, %v368
        %v384 = vmul.f32 %v319, %v368
        %v385 = vmul.f32 %v322, %v368
        %v386 = vmul.f32 %v325, %v368
        %v387 = vmul.f32 %v328, %v368
        %v388 = vmul.f32 %v331, %v368
        %v389 = vmul.f32 %v334, %v368
        %v390 = vmul.f32 %v337, %v368
        %v391 = vmul.f32 %v340, %v368
        %v392 = vmul.f32 %v343, %v368
        %v393 = vmul.f32 %v346, %v368
        %v394 = vmul.f32 %v349, %v368
        %v395 = vmul.f32 %v352, %v368
        %v396 = vmul.f32 %v355, %v368
        %v397 = vmul.f32 %v358, %v368
        %v398 = vmul.f32 %v361, %v368
        %v399 = vmul.f32 %v364, %v368
        %v400 = vmul.f32 %v367, %v368
        %v401 = vsub.f32 %v208, %v369
        %v402 = vsub.f32 %v209, %v369
        %v403 = vsub.f32 %v210, %v370
        %v404 = vsub.f32 %v211, %v370
        %v405 = vsub.f32 %v212, %v371
        %v406 = vsub.f32 %v213, %v371
        %v407 = vsub.f32 %v214, %v372
        %v408 = vsub.f32 %v215, %v372
        %v409 = vsub.f32 %v216, %v373
        %v410 = vsub.f32 %v217, %v373
        %v411 = vsub.f32 %v218, %v374
        %v412 = vsub.f32 %v219, %v374
        %v413 = vsub.f32 %v220, %v375
        %v414 = vsub.f32 %v221, %v375
        %v415 = vsub.f32 %v222, %v376
        %v416 = vsub.f32 %v223, %v376
        %v417 = vsub.f32 %v224, %v377
        %v418 = vsub.f32 %v225, %v377
        %v419 = vsub.f32 %v226, %v378
        %v420 = vsub.f32 %v227, %v378
        %v421 = vsub.f32 %v228, %v379
        %v422 = vsub.f32 %v229, %v379
        %v423 = vsub.f32 %v230, %v380
        %v424 = vsub.f32 %v231, %v380
        %v425 = vsub.f32 %v232, %v381
        %v426 = vsub.f32 %v233, %v381
        %v427 = vsub.f32 %v234, %v382
        %v428 = vsub.f32 %v235, %v382
        %v429 = vsub.f32 %v236, %v383
        %v430 = vsub.f32 %v237, %v383
        %v431 = vsub.f32 %v238, %v384
        %v432 = vsub.f32 %v239, %v384
        %v433 = vsub.f32 %v240, %v385
        %v434 = vsub.f32 %v241, %v385
        %v435 = vsub.f32 %v242, %v386
        %v436 = vsub.f32 %v243, %v386
        %v437 = vsub.f32 %v244, %v387
        %v438 = vsub.f32 %v245, %v387
        %v439 = vsub.f32 %v246, %v388
        %v440 = vsub.f32 %v247, %v388
        %v441 = vsub.f32 %v248, %v389
        %v442 = vsub.f32 %v249, %v389
        %v443 = vsub.f32 %v250, %v390
        %v444 = vsub.f32 %v251, %v390
        %v445 = vsub.f32 %v252, %v391
        %v446 = vsub.f32 %v253, %v391
        %v447 = vsub.f32 %v254, %v392
        %v448 = vsub.f32 %v255, %v392
        %v449 = vsub.f32 %v256, %v393
        %v450 = vsub.f32 %v257, %v393
        %v451 = vsub.f32 %v258, %v394
        %v452 = vsub.f32 %v259, %v394
        %v453 = vsub.f32 %v260, %v395
        %v454 = vsub.f32 %v261, %v395
        %v455 = vsub.f32 %v262, %v396
        %v456 = vsub.f32 %v263, %v396
        %v457 = vsub.f32 %v264, %v397
        %v458 = vsub.f32 %v265, %v397
        %v459 = vsub.f32 %v266, %v398
        %v460 = vsub.f32 %v267, %v398
        %v461 = vsub.f32 %v268, %v399
        %v462 = vsub.f32 %v269, %v399
        %v463 = vsub.f32 %v270, %v400
        %v464 = vsub.f32 %v271, %v400
        %v465 = vmul.f32 %v401, %v401
        %v466 = vmul.f32 %v402, %v402
        %v467 = vmul.f32 %v403, %v403
        %v468 = vmul.f32 %v404, %v404
        %v469 = vmul.f32 %v405, %v405
        %v470 = vmul.f32 %v406, %v406
        %v471 = vmul.f32 %v407, %v407
        %v472 = vmul.f32 %v408, %v408
        %v473 = vmul.f32 %v409, %v409
        %v474 = vmul.f32 %v410, %v410
        %v475 = vmul.f32 %v411, %v411
        %v476 = vmul.f32 %v412, %v412
        %v477 = vmul.f32 %v413, %v413
        %v478 = vmul.f32 %v414, %v414
        %v479 = vmul.f32 %v415, %v415
        %v480 = vmul.f32 %v416, %v416
        %v481 = vmul.f32 %v417, %v417
        %v482 = vmul.f32 %v418, %v418
        %v483 = vmul.f32 %v419, %v419
        %v484 = vmul.f32 %v420, %v420
        %v485 = vmul.f32 %v421, %v421
        %v486 = vmul.f32 %v422, %v422
        %v487 = vmul.f32 %v423, %v423
        %v488 = vmul.f32 %v424, %v424
        %v489 = vmul.f32 %v425, %v425
        %v490 = vmul.f32 %v426, %v426
        %v491 = vmul.f32 %v427, %v427
        %v492 = vmul.f32 %v428, %v428
        %v493 = vmul.f32 %v429, %v429
        %v494 = vmul.f32 %v430, %v430
        %v495 = vmul.f32 %v431, %v431
        %v496 = vmul.f32 %v432, %v432
        %v497 = vmul.f32 %v433, %v433
        %v498 = vmul.f32 %v434, %v434
        %v499 = vmul.f32 %v435, %v435
        %v500 = vmul.f32 %v436, %v436
        %v501 = vmul.f32 %v437, %v437
        %v502 = vmul.f32 %v438, %v438
        %v503 = vmul.f32 %v439, %v439
        %v504 = vmul.f32 %v440, %v440
        %v505 = vmul.f32 %v441, %v441
        %v506 = vmul.f32 %v442, %v442
        %v507 = vmul.f32 %v443, %v443
        %v508 = vmul.f32 %v444, %v444
        %v509 = vmul.f32 %v445, %v445
        %v510 = vmul.f32 %v446, %v446
        %v511 = vmul.f32 %v447, %v447
        %v512 = vmul.f32 %v448, %v448
        %v513 = vmul.f32 %v449, %v449
        %v514 = vmul.f32 %v450, %v450
        %v515 = vmul.f32 %v451, %v451
        %v516 = vmul.f32 %v452, %v452
        %v517 = vmul.f32 %v453, %v453
        %v518 = vmul.f32 %v454, %v454
        %v519 = vmul.f32 %v455, %v455
        %v520 = vmul.f32 %v456, %v456
        %v521 = vmul.f32 %v457, %v457
        %v522 = vmul.f32 %v458, %v458
        %v523 = vmul.f32 %v459, %v459
        %v524 = vmul.f32 %v460, %v460
        %v525 = vmul.f32 %v461, %v461
        %v526 = vmul.f32 %v462, %v462
        %v527 = vmul.f32 %v463, %v463
        %v528 = vmul.f32 %v464, %v464
        %v529 = vadd.f32 %v465, %v466
        %530 = vadd.xlane.f32.xlu0 %v529
        %v531 = vpop.xlane.xlu0 %530
        %v532 = vadd.f32 %v467, %v468
        %533 = vadd.xlane.f32.xlu0 %v532
        %v534 = vpop.xlane.xlu0 %533
        %v535 = vadd.f32 %v469, %v470
        %536 = vadd.xlane.f32.xlu0 %v535
        %v537 = vpop.xlane.xlu0 %536
        %v538 = vadd.f32 %v471, %v472
        %539 = vadd.xlane.f32.xlu0 %v538
        %v540 = vpop.xlane.xlu0 %539
        %v541 = vadd.f32 %v473, %v474
        %542 = vadd.xlane.f32.xlu0 %v541
        %v543 = vpop.xlane.xlu0 %542
        %v544 = vadd.f32 %v475, %v476
        %545 = vadd.xlane.f32.xlu0 %v544
        %v546 = vpop.xlane.xlu0 %545
        %v547 = vadd.f32 %v477, %v478
        %548 = vadd.xlane.f32.xlu0 %v547
        %v549 = vpop.xlane.xlu0 %548
        %v550 = vadd.f32 %v479, %v480
        %551 = vadd.xlane.f32.xlu0 %v550
        %v552 = vpop.xlane.xlu0 %551
        %v553 = vadd.f32 %v481, %v482
        %554 = vadd.xlane.f32.xlu0 %v553
        %v555 = vpop.xlane.xlu0 %554
        %v556 = vadd.f32 %v483, %v484
        %557 = vadd.xlane.f32.xlu0 %v556
        %v558 = vpop.xlane.xlu0 %557
        %v559 = vadd.f32 %v485, %v486
        %560 = vadd.xlane.f32.xlu0 %v559
        %v561 = vpop.xlane.xlu0 %560
        %v562 = vadd.f32 %v487, %v488
        %563 = vadd.xlane.f32.xlu0 %v562
        %v564 = vpop.xlane.xlu0 %563
        %v565 = vadd.f32 %v489, %v490
        %566 = vadd.xlane.f32.xlu0 %v565
        %v567 = vpop.xlane.xlu0 %566
        %v568 = vadd.f32 %v491, %v492
        %569 = vadd.xlane.f32.xlu0 %v568
        %v570 = vpop.xlane.xlu0 %569
        %v571 = vadd.f32 %v493, %v494
        %572 = vadd.xlane.f32.xlu0 %v571
        %v573 = vpop.xlane.xlu0 %572
        %v574 = vadd.f32 %v495, %v496
        %575 = vadd.xlane.f32.xlu0 %v574
        %v576 = vpop.xlane.xlu0 %575
        %v577 = vadd.f32 %v497, %v498
        %578 = vadd.xlane.f32.xlu0 %v577
        %v579 = vpop.xlane.xlu0 %578
        %v580 = vadd.f32 %v499, %v500
        %581 = vadd.xlane.f32.xlu0 %v580
        %v582 = vpop.xlane.xlu0 %581
        %v583 = vadd.f32 %v501, %v502
        %584 = vadd.xlane.f32.xlu0 %v583
        %v585 = vpop.xlane.xlu0 %584
        %v586 = vadd.f32 %v503, %v504
        %587 = vadd.xlane.f32.xlu0 %v586
        %v588 = vpop.xlane.xlu0 %587
        %v589 = vadd.f32 %v505, %v506
        %590 = vadd.xlane.f32.xlu0 %v589
        %v591 = vpop.xlane.xlu0 %590
        %v592 = vadd.f32 %v507, %v508
        %593 = vadd.xlane.f32.xlu0 %v592
        %v594 = vpop.xlane.xlu0 %593
        %v595 = vadd.f32 %v509, %v510
        %596 = vadd.xlane.f32.xlu0 %v595
        %v597 = vpop.xlane.xlu0 %596
        %v598 = vadd.f32 %v511, %v512
        %599 = vadd.xlane.f32.xlu0 %v598
        %v600 = vpop.xlane.xlu0 %599
        %v601 = vadd.f32 %v513, %v514
        %602 = vadd.xlane.f32.xlu0 %v601
        %v603 = vpop.xlane.xlu0 %602
        %v604 = vadd.f32 %v515, %v516
        %605 = vadd.xlane.f32.xlu0 %v604
        %v606 = vpop.xlane.xlu0 %605
        %v607 = vadd.f32 %v517, %v518
        %608 = vadd.xlane.f32.xlu0 %v607
        %v609 = vpop.xlane.xlu0 %608
        %v610 = vadd.f32 %v519, %v520
        %611 = vadd.xlane.f32.xlu0 %v610
        %v612 = vpop.xlane.xlu0 %611
        %v613 = vadd.f32 %v521, %v522
        %614 = vadd.xlane.f32.xlu0 %v613
        %v615 = vpop.xlane.xlu0 %614
        %v616 = vadd.f32 %v523, %v524
        %617 = vadd.xlane.f32.xlu0 %v616
        %v618 = vpop.xlane.xlu0 %617
        %v619 = vadd.f32 %v525, %v526
        %620 = vadd.xlane.f32.xlu0 %v619
        %v621 = vpop.xlane.xlu0 %620
        %v622 = vadd.f32 %v527, %v528
        %623 = vadd.xlane.f32.xlu0 %v622
        %v624 = vpop.xlane.xlu0 %623
        %v625 = vmul.f32 %v531, %v368
        %v626 = vmul.f32 %v534, %v368
        %v627 = vmul.f32 %v537, %v368
        %v628 = vmul.f32 %v540, %v368
        %v629 = vmul.f32 %v543, %v368
        %v630 = vmul.f32 %v546, %v368
        %v631 = vmul.f32 %v549, %v368
        %v632 = vmul.f32 %v552, %v368
        %v633 = vmul.f32 %v555, %v368
        %v634 = vmul.f32 %v558, %v368
        %v635 = vmul.f32 %v561, %v368
        %v636 = vmul.f32 %v564, %v368
        %v637 = vmul.f32 %v567, %v368
        %v638 = vmul.f32 %v570, %v368
        %v639 = vmul.f32 %v573, %v368
        %v640 = vmul.f32 %v576, %v368
        %v641 = vmul.f32 %v579, %v368
        %v642 = vmul.f32 %v582, %v368
        %v643 = vmul.f32 %v585, %v368
        %v644 = vmul.f32 %v588, %v368
        %v645 = vmul.f32 %v591, %v368
        %v646 = vmul.f32 %v594, %v368
        %v647 = vmul.f32 %v597, %v368
        %v648 = vmul.f32 %v600, %v368
        %v649 = vmul.f32 %v603, %v368
        %v650 = vmul.f32 %v606, %v368
        %v651 = vmul.f32 %v609, %v368
        %v652 = vmul.f32 %v612, %v368
        %v653 = vmul.f32 %v615, %v368
        %v654 = vmul.f32 %v618, %v368
        %v655 = vmul.f32 %v621, %v368
        %v656 = vmul.f32 %v624, %v368
        %v657 = vadd.f32 %v625, 1e-05
        %v658 = vadd.f32 %v626, 1e-05
        %v659 = vadd.f32 %v627, 1e-05
        %v660 = vadd.f32 %v628, 1e-05
        %v661 = vadd.f32 %v629, 1e-05
        %v662 = vadd.f32 %v630, 1e-05
        %v663 = vadd.f32 %v631, 1e-05
        %v664 = vadd.f32 %v632, 1e-05
        %v665 = vadd.f32 %v633, 1e-05
        %v666 = vadd.f32 %v634, 1e-05
        %v667 = vadd.f32 %v635, 1e-05
        %v668 = vadd.f32 %v636, 1e-05
        %v669 = vadd.f32 %v637, 1e-05
        %v670 = vadd.f32 %v638, 1e-05
        %v671 = vadd.f32 %v639, 1e-05
        %v672 = vadd.f32 %v640, 1e-05
        %v673 = vadd.f32 %v641, 1e-05
        %v674 = vadd.f32 %v642, 1e-05
        %v675 = vadd.f32 %v643, 1e-05
        %v676 = vadd.f32 %v644, 1e-05
        %v677 = vadd.f32 %v645, 1e-05
        %v678 = vadd.f32 %v646, 1e-05
        %v679 = vadd.f32 %v647, 1e-05
        %v680 = vadd.f32 %v648, 1e-05
        %v681 = vadd.f32 %v649, 1e-05
        %v682 = vadd.f32 %v650, 1e-05
        %v683 = vadd.f32 %v651, 1e-05
        %v684 = vadd.f32 %v652, 1e-05
        %v685 = vadd.f32 %v653, 1e-05
        %v686 = vadd.f32 %v654, 1e-05
        %v687 = vadd.f32 %v655, 1e-05
        %v688 = vadd.f32 %v656, 1e-05
        %v689 = vrsqrt.pop %v657
        %v690 = vrsqrt.pop %v658
        %v691 = vrsqrt.pop %v659
        %v692 = vrsqrt.pop %v660
        %v693 = vrsqrt.pop %v661
        %v694 = vrsqrt.pop %v662
        %v695 = vrsqrt.pop %v663
        %v696 = vrsqrt.pop %v664
        %v697 = vrsqrt.pop %v665
        %v698 = vrsqrt.pop %v666
        %v699 = vrsqrt.pop %v667
        %v700 = vrsqrt.pop %v668
        %v701 = vrsqrt.pop %v669
        %v702 = vrsqrt.pop %v670
        %v703 = vrsqrt.pop %v671
        %v704 = vrsqrt.pop %v672
        %v705 = vrsqrt.pop %v673
        %v706 = vrsqrt.pop %v674
        %v707 = vrsqrt.pop %v675
        %v708 = vrsqrt.pop %v676
        %v709 = vrsqrt.pop %v677
        %v710 = vrsqrt.pop %v678
        %v711 = vrsqrt.pop %v679
        %v712 = vrsqrt.pop %v680
        %v713 = vrsqrt.pop %v681
        %v714 = vrsqrt.pop %v682
        %v715 = vrsqrt.pop %v683
        %v716 = vrsqrt.pop %v684
        %v717 = vrsqrt.pop %v685
        %v718 = vrsqrt.pop %v686
        %v719 = vrsqrt.pop %v687
        %v720 = vrsqrt.pop %v688
        %v721 = vmul.f32 %v401, %v689
        %v722 = vmul.f32 %v402, %v689
        %v723 = vmul.f32 %v403, %v690
        %v724 = vmul.f32 %v404, %v690
        %v725 = vmul.f32 %v405, %v691
        %v726 = vmul.f32 %v406, %v691
        %v727 = vmul.f32 %v407, %v692
        %v728 = vmul.f32 %v408, %v692
        %v729 = vmul.f32 %v409, %v693
        %v730 = vmul.f32 %v410, %v693
        %v731 = vmul.f32 %v411, %v694
        %v732 = vmul.f32 %v412, %v694
        %v733 = vmul.f32 %v413, %v695
        %v734 = vmul.f32 %v414, %v695
        %v735 = vmul.f32 %v415, %v696
        %v736 = vmul.f32 %v416, %v696
        %v737 = vmul.f32 %v417, %v697
        %v738 = vmul.f32 %v418, %v697
        %v739 = vmul.f32 %v419, %v698
        %v740 = vmul.f32 %v420, %v698
        %v741 = vmul.f32 %v421, %v699
        %v742 = vmul.f32 %v422, %v699
        %v743 = vmul.f32 %v423, %v700
        %v744 = vmul.f32 %v424, %v700
        %v745 = vmul.f32 %v425, %v701
        %v746 = vmul.f32 %v426, %v701
        %v747 = vmul.f32 %v427, %v702
        %v748 = vmul.f32 %v428, %v702
        %v749 = vmul.f32 %v429, %v703
        %v750 = vmul.f32 %v430, %v703
        %v751 = vmul.f32 %v431, %v704
        %v752 = vmul.f32 %v432, %v704
        %v753 = vmul.f32 %v433, %v705
        %v754 = vmul.f32 %v434, %v705
        %v755 = vmul.f32 %v435, %v706
        %v756 = vmul.f32 %v436, %v706
        %v757 = vmul.f32 %v437, %v707
        %v758 = vmul.f32 %v438, %v707
        %v759 = vmul.f32 %v439, %v708
        %v760 = vmul.f32 %v440, %v708
        %v761 = vmul.f32 %v441, %v709
        %v762 = vmul.f32 %v442, %v709
        %v763 = vmul.f32 %v443, %v710
        %v764 = vmul.f32 %v444, %v710
        %v765 = vmul.f32 %v445, %v711
        %v766 = vmul.f32 %v446, %v711
        %v767 = vmul.f32 %v447, %v712
        %v768 = vmul.f32 %v448, %v712
        %v769 = vmul.f32 %v449, %v713
        %v770 = vmul.f32 %v450, %v713
        %v771 = vmul.f32 %v451, %v714
        %v772 = vmul.f32 %v452, %v714
        %v773 = vmul.f32 %v453, %v715
        %v774 = vmul.f32 %v454, %v715
        %v775 = vmul.f32 %v455, %v716
        %v776 = vmul.f32 %v456, %v716
        %v777 = vmul.f32 %v457, %v717
        %v778 = vmul.f32 %v458, %v717
        %v779 = vmul.f32 %v459, %v718
        %v780 = vmul.f32 %v460, %v718
        %v781 = vmul.f32 %v461, %v719
        %v782 = vmul.f32 %v462, %v719
        %v783 = vmul.f32 %v463, %v720
        %v784 = vmul.f32 %v464, %v720
        %v785 = vpack.c.bf16 %v723, %v721
        %v786 = vpack.c.bf16 %v724, %v722
        %v787 = vpack.c.bf16 %v727, %v725
        %v788 = vpack.c.bf16 %v728, %v726
        %v789 = vpack.c.bf16 %v731, %v729
        %v790 = vpack.c.bf16 %v732, %v730
        %v791 = vpack.c.bf16 %v735, %v733
        %v792 = vpack.c.bf16 %v736, %v734
        %v793 = vpack.c.bf16 %v739, %v737
        %v794 = vpack.c.bf16 %v740, %v738
        %v795 = vpack.c.bf16 %v743, %v741
        %v796 = vpack.c.bf16 %v744, %v742
        %v797 = vpack.c.bf16 %v747, %v745
        %v798 = vpack.c.bf16 %v748, %v746
        %v799 = vpack.c.bf16 %v751, %v749
        %v800 = vpack.c.bf16 %v752, %v750
        %v801 = vpack.c.bf16 %v755, %v753
        %v802 = vpack.c.bf16 %v756, %v754
        %v803 = vpack.c.bf16 %v759, %v757
        %v804 = vpack.c.bf16 %v760, %v758
        %v805 = vpack.c.bf16 %v763, %v761
        %v806 = vpack.c.bf16 %v764, %v762
        %v807 = vpack.c.bf16 %v767, %v765
        %v808 = vpack.c.bf16 %v768, %v766
        %v809 = vpack.c.bf16 %v771, %v769
        %v810 = vpack.c.bf16 %v772, %v770
        %v811 = vpack.c.bf16 %v775, %v773
        %v812 = vpack.c.bf16 %v776, %v774
        %v813 = vpack.c.bf16 %v779, %v777
        %v814 = vpack.c.bf16 %v780, %v778
        %v815 = vpack.c.bf16 %v783, %v781
        %v816 = vpack.c.bf16 %v784, %v782
        %v817 = vld [vmem:[%s1] sm:$0xf]
        %v818 = vld [vmem:[%s1 + $0x4] sm:$0xf]
        %v819 = vld [vmem:[%s1 + $0x8] sm:$0xf]
        %v820 = vld [vmem:[%s1 + $0xc] sm:$0xf]
        %v821 = vld [vmem:[%s1 + $0x10] sm:$0xf]
        %v822 = vld [vmem:[%s1 + $0x14] sm:$0xf]
        %v823 = vld [vmem:[%s1 + $0x18] sm:$0xf]
        %v824 = vld [vmem:[%s1 + $0x1c] sm:$0xf]
        %v825 = vld [vmem:[%s1 + $0x20] sm:$0xf]
        %v826 = vld [vmem:[%s1 + $0x24] sm:$0xf]
        %v827 = vld [vmem:[%s1 + $0x28] sm:$0xf]
        %v828 = vld [vmem:[%s1 + $0x2c] sm:$0xf]
        %v829 = vld [vmem:[%s1 + $0x30] sm:$0xf]
        %v830 = vld [vmem:[%s1 + $0x34] sm:$0xf]
        %v831 = vld [vmem:[%s1 + $0x38] sm:$0xf]
        %v832 = vld [vmem:[%s1 + $0x3c] sm:$0xf]
        %v833 = vld [vmem:[%s1 + $0x40] sm:$0xf]
        %v834 = vld [vmem:[%s1 + $0x44] sm:$0xf]
        %v835 = vld [vmem:[%s1 + $0x48] sm:$0xf]
        %v836 = vld [vmem:[%s1 + $0x4c] sm:$0xf]
        %v837 = vld [vmem:[%s1 + $0x50] sm:$0xf]
        %v838 = vld [vmem:[%s1 + $0x54] sm:$0xf]
        %v839 = vld [vmem:[%s1 + $0x58] sm:$0xf]
        %v840 = vld [vmem:[%s1 + $0x5c] sm:$0xf]
        %v841 = vld [vmem:[%s1 + $0x60] sm:$0xf]
        %v842 = vld [vmem:[%s1 + $0x64] sm:$0xf]
        %v843 = vld [vmem:[%s1 + $0x68] sm:$0xf]
        %v844 = vld [vmem:[%s1 + $0x6c] sm:$0xf]
        %v845 = vld [vmem:[%s1 + $0x70] sm:$0xf]
        %v846 = vld [vmem:[%s1 + $0x74] sm:$0xf]
        %v847 = vld [vmem:[%s1 + $0x78] sm:$0xf]
        %v848 = vld [vmem:[%s1 + $0x7c] sm:$0xf]
        %v849 = vld [vmem:[%s2] sm:$0x1]
        %v851 = vlaneseq
        %v852 = vshrl.u32 %v851, 7
        %v853 = vsub.s32 0, %v852
        %v854 = vrot.slane %v849, %v853
        %v888 = vunpack.c.l.b16 %v817
        %v889 = vunpack.c.l.b16 %v818
        %v890 = vunpack.c.l.b16 %v819
        %v891 = vunpack.c.l.b16 %v820
        %v892 = vunpack.c.l.b16 %v821
        %v893 = vunpack.c.l.b16 %v822
        %v894 = vunpack.c.l.b16 %v823
        %v895 = vunpack.c.l.b16 %v824
        %v896 = vunpack.c.l.b16 %v825
        %v897 = vunpack.c.l.b16 %v826
        %v898 = vunpack.c.l.b16 %v827
        %v899 = vunpack.c.l.b16 %v828
        %v900 = vunpack.c.l.b16 %v829
        %v901 = vunpack.c.l.b16 %v830
        %v902 = vunpack.c.l.b16 %v831
        %v903 = vunpack.c.l.b16 %v832
        %v904 = vunpack.c.l.b16 %v833
        %v905 = vunpack.c.l.b16 %v834
        %v906 = vunpack.c.l.b16 %v835
        %v907 = vunpack.c.l.b16 %v836
        %v908 = vunpack.c.l.b16 %v837
        %v909 = vunpack.c.l.b16 %v838
        %v910 = vunpack.c.l.b16 %v839
        %v911 = vunpack.c.l.b16 %v840
        %v912 = vunpack.c.l.b16 %v841
        %v913 = vunpack.c.l.b16 %v842
        %v914 = vunpack.c.l.b16 %v843
        %v915 = vunpack.c.l.b16 %v844
        %v916 = vunpack.c.l.b16 %v845
        %v917 = vunpack.c.l.b16 %v846
        %v918 = vunpack.c.l.b16 %v847
        %v919 = vunpack.c.l.b16 %v848
        %v920 = vpack.c.b16 %v889, %v888
        %v921 = vpack.c.b16 %v891, %v890
        %v922 = vpack.c.b16 %v893, %v892
        %v923 = vpack.c.b16 %v895, %v894
        %v924 = vpack.c.b16 %v897, %v896
        %v925 = vpack.c.b16 %v899, %v898
        %v926 = vpack.c.b16 %v901, %v900
        %v927 = vpack.c.b16 %v903, %v902
        %v928 = vpack.c.b16 %v905, %v904
        %v929 = vpack.c.b16 %v907, %v906
        %v930 = vpack.c.b16 %v909, %v908
        %v931 = vpack.c.b16 %v911, %v910
        %v932 = vpack.c.b16 %v913, %v912
        %v933 = vpack.c.b16 %v915, %v914
        %v934 = vpack.c.b16 %v917, %v916
        %v935 = vpack.c.b16 %v919, %v918
        %952 = vmatprep.subr.bf16.mxu0 0
        %953 = vmatpush1.bf16.msra.mxu0 %v920
        %954 = vmatprep.subr.bf16.mxu0 0
        %955 = vmatpush1.bf16.msra.mxu0 %v921
        %956 = vmatprep.subr.bf16.mxu0 0
        %957 = vmatpush1.bf16.msra.mxu0 %v922
        %958 = vmatprep.subr.bf16.mxu0 0
        %959 = vmatpush1.bf16.msra.mxu0 %v923
        %960 = vmatprep.subr.bf16.mxu0 0
        %961 = vmatpush1.bf16.msra.mxu0 %v924
        %962 = vmatprep.subr.bf16.mxu0 0
        %963 = vmatpush1.bf16.msra.mxu0 %v925
        %964 = vmatprep.subr.bf16.mxu0 0
        %965 = vmatpush1.bf16.msra.mxu0 %v926
        %966 = vmatprep.subr.bf16.mxu0 0
        %967 = vmatpush1.bf16.msra.mxu0 %v927
        %968 = vmatprep.subr.bf16.mxu0 0
        %969 = vmatpush1.bf16.msra.mxu0 %v928
        %970 = vmatprep.subr.bf16.mxu0 0
        %971 = vmatpush1.bf16.msra.mxu0 %v929
        %972 = vmatprep.subr.bf16.mxu0 0
        %973 = vmatpush1.bf16.msra.mxu0 %v930
        %974 = vmatprep.subr.bf16.mxu0 0
        %975 = vmatpush1.bf16.msra.mxu0 %v931
        %976 = vmatprep.subr.bf16.mxu0 0
        %977 = vmatpush1.bf16.msra.mxu0 %v932
        %978 = vmatprep.subr.bf16.mxu0 0
        %979 = vmatpush1.bf16.msra.mxu0 %v933
        %980 = vmatprep.subr.bf16.mxu0 0
        %981 = vmatpush1.bf16.msra.mxu0 %v934
        %982 = vmatprep.subr.bf16.mxu0 0
        %983 = vmatpush1.bf16.msra.mxu0 %v935
        %984 = vmatprep.mubr.bf16.mxu0 %v786
        %985 = vmatmul.mubr.bf16.gmra.mrb[0].mxu0 %v785
        %v986 = vpop.f32.mrb[0].mxu0
        %v987 = vadd.f32 %v854, %v986
        %v988 = vpop.f32.mrb[0].mxu0
        %v989 = vpop.f32.mrb[0].mxu0
        %v990 = vadd.f32 %v854, %v989
        %v991 = vpop.f32.mrb[0].mxu0
        %992 = vmatprep.mubr.bf16.mxu0 %v788
        %993 = vmatmul.mubr.bf16.gmra.mrb[0].mxu0 %v787
        %v994 = vpop.f32.mrb[0].mxu0
        %v995 = vadd.f32 %v854, %v994
        %v996 = vpop.f32.mrb[0].mxu0
        %v997 = vpop.f32.mrb[0].mxu0
        %v998 = vadd.f32 %v854, %v997
        %v999 = vpop.f32.mrb[0].mxu0
        %1000 = vmatprep.mubr.bf16.mxu0 %v790
        %1001 = vmatmul.mubr.bf16.gmra.mrb[0].mxu0 %v789
        %v1002 = vpop.f32.mrb[0].mxu0
        %v1003 = vadd.f32 %v854, %v1002
        %v1004 = vpop.f32.mrb[0].mxu0
        %v1005 = vpop.f32.mrb[0].mxu0
        %v1006 = vadd.f32 %v854, %v1005
        %v1007 = vpop.f32.mrb[0].mxu0
        %1008 = vmatprep.mubr.bf16.mxu0 %v792
        %1009 = vmatmul.mubr.bf16.gmra.mrb[0].mxu0 %v791
        %v1010 = vpop.f32.mrb[0].mxu0
        %v1011 = vadd.f32 %v854, %v1010
        %v1012 = vpop.f32.mrb[0].mxu0
        %v1013 = vpop.f32.mrb[0].mxu0
        %v1014 = vadd.f32 %v854, %v1013
        %v1015 = vpop.f32.mrb[0].mxu0
        %1016 = vmatprep.mubr.bf16.mxu0 %v794
        %1017 = vmatmul.mubr.bf16.gmra.mrb[0].mxu0 %v793
        %v1018 = vpop.f32.mrb[0].mxu0
        %v1019 = vadd.f32 %v854, %v1018
        %v1020 = vpop.f32.mrb[0].mxu0
        %v1021 = vpop.f32.mrb[0].mxu0
        %v1022 = vadd.f32 %v854, %v1021
        %v1023 = vpop.f32.mrb[0].mxu0
        %1024 = vmatprep.mubr.bf16.mxu0 %v796
        %1025 = vmatmul.mubr.bf16.gmra.mrb[0].mxu0 %v795
        %v1026 = vpop.f32.mrb[0].mxu0
        %v1027 = vadd.f32 %v854, %v1026
        %v1028 = vpop.f32.mrb[0].mxu0
        %v1029 = vpop.f32.mrb[0].mxu0
        %v1030 = vadd.f32 %v854, %v1029
        %v1031 = vpop.f32.mrb[0].mxu0
        %1032 = vmatprep.mubr.bf16.mxu0 %v798
        %1033 = vmatmul.mubr.bf16.gmra.mrb[0].mxu0 %v797
        %v1034 = vpop.f32.mrb[0].mxu0
        %v1035 = vadd.f32 %v854, %v1034
        %v1036 = vpop.f32.mrb[0].mxu0
        %v1037 = vpop.f32.mrb[0].mxu0
        %v1038 = vadd.f32 %v854, %v1037
        %v1039 = vpop.f32.mrb[0].mxu0
        %1040 = vmatprep.mubr.bf16.mxu0 %v800
        %1041 = vmatmul.mubr.bf16.gmra.mrb[0].mxu0 %v799
        %v1042 = vpop.f32.mrb[0].mxu0
        %v1043 = vadd.f32 %v854, %v1042
        %v1044 = vpop.f32.mrb[0].mxu0
        %v1045 = vpop.f32.mrb[0].mxu0
        %v1046 = vadd.f32 %v854, %v1045
        %v1047 = vpop.f32.mrb[0].mxu0
        %1048 = vmatprep.mubr.bf16.mxu0 %v802
        %1049 = vmatmul.mubr.bf16.gmra.mrb[0].mxu0 %v801
        %v1050 = vpop.f32.mrb[0].mxu0
        %v1051 = vadd.f32 %v854, %v1050
        %v1052 = vpop.f32.mrb[0].mxu0
        %v1053 = vpop.f32.mrb[0].mxu0
        %v1054 = vadd.f32 %v854, %v1053
        %v1055 = vpop.f32.mrb[0].mxu0
        %1056 = vmatprep.mubr.bf16.mxu0 %v804
        %1057 = vmatmul.mubr.bf16.gmra.mrb[0].mxu0 %v803
        %v1058 = vpop.f32.mrb[0].mxu0
        %v1059 = vadd.f32 %v854, %v1058
        %v1060 = vpop.f32.mrb[0].mxu0
        %v1061 = vpop.f32.mrb[0].mxu0
        %v1062 = vadd.f32 %v854, %v1061
        %v1063 = vpop.f32.mrb[0].mxu0
        %1064 = vmatprep.mubr.bf16.mxu0 %v806
        %1065 = vmatmul.mubr.bf16.gmra.mrb[0].mxu0 %v805
        %v1066 = vpop.f32.mrb[0].mxu0
        %v1067 = vadd.f32 %v854, %v1066
        %v1068 = vpop.f32.mrb[0].mxu0
        %v1069 = vpop.f32.mrb[0].mxu0
        %v1070 = vadd.f32 %v854, %v1069
        %v1071 = vpop.f32.mrb[0].mxu0
        %1072 = vmatprep.mubr.bf16.mxu0 %v808
        %1073 = vmatmul.mubr.bf16.gmra.mrb[0].mxu0 %v807
        %v1074 = vpop.f32.mrb[0].mxu0
        %v1075 = vadd.f32 %v854, %v1074
        %v1076 = vpop.f32.mrb[0].mxu0
        %v1077 = vpop.f32.mrb[0].mxu0
        %v1078 = vadd.f32 %v854, %v1077
        %v1079 = vpop.f32.mrb[0].mxu0
        %1080 = vmatprep.mubr.bf16.mxu0 %v810
        %1081 = vmatmul.mubr.bf16.gmra.mrb[0].mxu0 %v809
        %v1082 = vpop.f32.mrb[0].mxu0
        %v1083 = vadd.f32 %v854, %v1082
        %v1084 = vpop.f32.mrb[0].mxu0
        %v1085 = vpop.f32.mrb[0].mxu0
        %v1086 = vadd.f32 %v854, %v1085
        %v1087 = vpop.f32.mrb[0].mxu0
        %1088 = vmatprep.mubr.bf16.mxu0 %v812
        %1089 = vmatmul.mubr.bf16.gmra.mrb[0].mxu0 %v811
        %v1090 = vpop.f32.mrb[0].mxu0
        %v1091 = vadd.f32 %v854, %v1090
        %v1092 = vpop.f32.mrb[0].mxu0
        %v1093 = vpop.f32.mrb[0].mxu0
        %v1094 = vadd.f32 %v854, %v1093
        %v1095 = vpop.f32.mrb[0].mxu0
        %1096 = vmatprep.mubr.bf16.mxu0 %v814
        %1097 = vmatmul.mubr.bf16.gmra.mrb[0].mxu0 %v813
        %v1098 = vpop.f32.mrb[0].mxu0
        %v1099 = vadd.f32 %v854, %v1098
        %v1100 = vpop.f32.mrb[0].mxu0
        %v1101 = vpop.f32.mrb[0].mxu0
        %v1102 = vadd.f32 %v854, %v1101
        %v1103 = vpop.f32.mrb[0].mxu0
        %1104 = vmatprep.mubr.bf16.mxu0 %v816
        %1105 = vmatmul.mubr.bf16.gmra.mrb[0].mxu0 %v815
        %v1106 = vpop.f32.mrb[0].mxu0
        %v1107 = vadd.f32 %v854, %v1106
        %v1108 = vpop.f32.mrb[0].mxu0
        %v1109 = vpop.f32.mrb[0].mxu0
        %v1110 = vadd.f32 %v854, %v1109
        %v1111 = vpop.f32.mrb[0].mxu0
        %1112 = vdwg.mxu0
        %1113 = vst [vmem:[%s166] sm:$0xff] %v987
        %1114 = vst [vmem:[%s166 + $0x8] sm:$0xff] %v990
        %1115 = vst [vmem:[%s166 + $0x10] sm:$0xff] %v995
        %1116 = vst [vmem:[%s166 + $0x18] sm:$0xff] %v998
        %1117 = vst [vmem:[%s166 + $0x20] sm:$0xff] %v1003
        %1118 = vst [vmem:[%s166 + $0x28] sm:$0xff] %v1006
        %1119 = vst [vmem:[%s166 + $0x30] sm:$0xff] %v1011
        %1120 = vst [vmem:[%s166 + $0x38] sm:$0xff] %v1014
        %1121 = vst [vmem:[%s166 + $0x40] sm:$0xff] %v1019
        %1122 = vst [vmem:[%s166 + $0x48] sm:$0xff] %v1022
        %1123 = vst [vmem:[%s166 + $0x50] sm:$0xff] %v1027
        %1124 = vst [vmem:[%s166 + $0x58] sm:$0xff] %v1030
        %1125 = vst [vmem:[%s166 + $0x60] sm:$0xff] %v1035
        %1126 = vst [vmem:[%s166 + $0x68] sm:$0xff] %v1038
        %1127 = vst [vmem:[%s166 + $0x70] sm:$0xff] %v1043
        %1128 = vst [vmem:[%s166 + $0x78] sm:$0xff] %v1046
        %1129 = vst [vmem:[%s166 + $0x80] sm:$0xff] %v1051
        %1130 = vst [vmem:[%s166 + $0x88] sm:$0xff] %v1054
        %1131 = vst [vmem:[%s166 + $0x90] sm:$0xff] %v1059
        %1132 = vst [vmem:[%s166 + $0x98] sm:$0xff] %v1062
        %1133 = vst [vmem:[%s166 + $0xa0] sm:$0xff] %v1067
        %1134 = vst [vmem:[%s166 + $0xa8] sm:$0xff] %v1070
        %1135 = vst [vmem:[%s166 + $0xb0] sm:$0xff] %v1075
        %1136 = vst [vmem:[%s166 + $0xb8] sm:$0xff] %v1078
        %1137 = vst [vmem:[%s166 + $0xc0] sm:$0xff] %v1083
        %1138 = vst [vmem:[%s166 + $0xc8] sm:$0xff] %v1086
        %1139 = vst [vmem:[%s166 + $0xd0] sm:$0xff] %v1091
        %1140 = vst [vmem:[%s166 + $0xd8] sm:$0xff] %v1094
        %1141 = vst [vmem:[%s166 + $0xe0] sm:$0xff] %v1099
        %1142 = vst [vmem:[%s166 + $0xe8] sm:$0xff] %v1102
        %1143 = vst [vmem:[%s166 + $0xf0] sm:$0xff] %v1107
        %1144 = vst [vmem:[%s166 + $0xf8] sm:$0xff] %v1110
        %s1145 = sand.u32 %s93, 1
        %s1146 = scalar_lea.sflag [#allocation3], %s1145
        %s1147 = sand.u32 %s93, 1
        %s1148 = smul.addr %s1147, 256
        %s1149 = scalar_lea.vmem [#allocation2], %s1148
        // Predicated region
        $region33: #{patch_merging_forward.1} parent=31 // pred_check
          %p1150 = pneg %p103
        $region34: #{patch_merging_forward.1} parent=31 // pred_check_branch
          %1152 = sbr.rel (%p1150) target = $region36
        $region35: #{patch_merging_forward.1} parent=31 // pred_region
          %s1153 = smul.u32 32, %s17
          %s1155 = ssub.s32 4096, 4096
          %1156 = vsyncadd %s1146, %s1155
          %s1157 = smul.addr %s1153, 128
          %s1158 = scalar_lea.hbm %s3, %s1157
          %s1159 = sshll.u32 %s1149, 4
          %s1160 = int_to_ptr.vmem [resolvable:$true] %s1159
          %1165 = dma.vmem_to_hbm [thread:$0]  %s1160, 4096, %s1158, %s1146, 128, 128, 8
        $region36: #{patch_merging_forward.1} parent=31 // pred_fallthru
          _
      $region32: #{patch_merging_forward.1} parent=5 // pred_fallthru
        _
      %p1166 = scmp.le.s32.totalorder 2, %s12
      // Predicated region
      $region37: #{patch_merging_forward.1} parent=5 // pred_check
        %p1167 = pneg %p1166
      $region38: #{patch_merging_forward.1} parent=5 // pred_check_branch
        %1169 = sbr.rel (%p1167) target = $region40
      $region39: #{patch_merging_forward.1} parent=5 // pred_region
        %s1170 = ssub.s32 %s12, 2
        // Predicated region
        $region41: #{patch_merging_forward.1} parent=39 // pred_check
          %p1171 = pneg %p109
        $region42: #{patch_merging_forward.1} parent=39 // pred_check_branch
          %1173 = sbr.rel (%p1171) target = $region44
        $region43: #{patch_merging_forward.1} parent=39 // pred_region
          %s1174 = sand.u32 %s94, 1
          %s1175 = scalar_lea.sflag [#allocation3], %s1174
          %s1176 = sand.u32 %s94, 1
          %s1177 = smul.addr %s1176, 256
          %s1178 = scalar_lea.vmem [#allocation2], %s1177
          %1179 = dma.done %s1175, 4096
        $region44: #{patch_merging_forward.1} parent=39 // pred_fallthru
          _
      $region40: #{patch_merging_forward.1} parent=5 // pred_fallthru
        _
    $region6: #{patch_merging_forward.1} parent=1 // loop_footer
      %s16 = sadd.s32 1, %s12
    $region7: #{patch_merging_forward.1} parent=1 // loop_footer_branch
      %11 = sbr.rel target = $region3
    $region8: #{patch_merging_forward.1} parent=1 // loop_exit
      _
    %1180 = vsyncpa [#allocation3], 1
    %s1181 = scalar_lea.sflag [#allocation3], 1
    %1182 = vsyncpa %s1181, 1

</llo_original>
